<compile_context>
chip_gen: v7x
topology: tpu7x:2x2x1
jax: 0.10.0
libtpu: 0.0.40
codegen_flags: <defaults>
</compile_context>

<pallas_src>
import dataclasses
import math

import jax
import jax.numpy as jnp
from jax.experimental import pallas as pl
from jax.experimental.pallas import tpu as pltpu


def _round_up(x, m):
    return (x + m - 1) // m * m


def _vmem_budget_bytes():
    """Chip-aware usable-VMEM budget (~75% of physical capacity)."""
    cap = 64 << 20  # conservative fallback = v7x physical VMEM
    try:
        info = pltpu.get_tpu_info()
        cap = int(getattr(info, "vmem_capacity_bytes", cap))
    except Exception:
        pass
    # 128 MiB (v5e/v6e) -> 96 MiB budget; 64 MiB (v7x) -> 48 MiB budget.
    return (cap * 3) // 4


def _choose_tiles(k_total, outdims, in_bytes, budget, tn_req, tk_req, align=256):
    """Pick lane-dense, MXU-aligned tiles whose double-buffered weight stream
    fits the VMEM budget (a slice of the budget is reserved for x / output)."""
    tn = min(_round_up(tn_req, align), _round_up(outdims, align))
    tk = min(_round_up(tk_req, align), _round_up(k_total, align))
    w_budget = budget - min(budget // 3, 24 << 20)
    while 2 * tn * tk * in_bytes > w_budget:      # 2x = double-buffered weight
        if tk >= tn and tk > align:
            tk = max(align, _round_up(tk // 2, align))
        elif tn > align:
            tn = max(align, _round_up(tn // 2, align))
        else:
            break
    return tn, tk


@dataclasses.dataclass(frozen=True)
class DenseReadoutParams:
    """One-time-prepared parameters (do this at model init, not per forward)."""
    w_t: jax.Array        # (k_pad, n_pad) pre-transposed weight, compute dtype
    bias_row: jax.Array   # (1, n_pad) f32
    outdims: int
    k_total: int
    tn: int
    tk: int


def prepare_dense_readout(weight, bias, *, tn=2048, tk=4096,
                          compute_dtype=jnp.bfloat16):
    """Pre-transpose / cast / zero-pad readout params once (hoisted layout
    plumbing: this is the only place that touches the full weight in HBM
    outside of the kernel's own single streamed read).

    weight: (outdims, C*W*H)   bias: (outdims,) or None
    """
    outdims, k_total = weight.shape
    in_bytes = jnp.dtype(compute_dtype).itemsize
    budget = _vmem_budget_bytes()
    tn, tk = _choose_tiles(k_total, outdims, in_bytes, budget, tn, tk)
    n_pad = _round_up(outdims, tn)
    k_pad = _round_up(k_total, tk)

    w_t = jnp.zeros((k_pad, n_pad), dtype=compute_dtype)
    w_t = w_t.at[:k_total, :outdims].set(weight.T.astype(compute_dtype))

    bias_row = jnp.zeros((1, n_pad), dtype=jnp.float32)
    if bias is not None:
        bias_row = bias_row.at[0, :outdims].set(bias.astype(jnp.float32))

    return DenseReadoutParams(w_t=w_t, bias_row=bias_row, outdims=outdims,
                              k_total=k_total, tn=tn, tk=tk)


def _make_kernel(tk, x_resident):
    """Grid = (N tiles [parallel], K tiles [reduction, last])."""

    def kernel(x_ref, w_ref, b_ref, o_ref):
        k = pl.program_id(1)

        @pl.when(k == 0)
        def _init():
            # f32 output tile is resident across K; initialize with the bias
            # and accumulate directly into it (no extra VMEM scratch).
            o_ref[...] = jnp.broadcast_to(b_ref[...], o_ref.shape)

        if x_resident:
            # x lives fully in VMEM (fetched once); slice the current
            # 128-aligned K window.
            off = pl.multiple_of(k * tk, tk)
            x_tile = x_ref[:, pl.ds(off, tk)]
        else:
            x_tile = x_ref[...]

        # Plain (B, tk) @ (tk, tn) contraction: the weight was pre-transposed
        # at prep time, so no transposed-RHS lowering / per-tile XLU transpose.
        o_ref[...] += jnp.dot(x_tile, w_ref[...],
                              preferred_element_type=jnp.float32)

    return kernel


def dense_readout_apply(x, params, *, compute_dtype=jnp.bfloat16):
    """y = x.reshape(B, C*W*H) @ weight.T + bias, using prepared params."""
    b = x.shape[0]
    k_total = math.prod(x.shape[1:])
    assert k_total == params.k_total, "x feature size does not match weight"

    tn, tk = params.tn, params.tk
    k_pad, n_pad = params.w_t.shape
    outdims = params.outdims
    out_dtype = x.dtype
    in_bytes = jnp.dtype(compute_dtype).itemsize

    # Pad batch to a sublane multiple so output stores are unmasked (vst, not
    # vst.msk) and MXU M is not under-filled.
    b_pad = max(8, _round_up(b, 8))

    x_flat = x.reshape(b, k_total).astype(compute_dtype)
    if b_pad != b or k_pad != k_total:
        x_flat = jnp.pad(x_flat, ((0, b_pad - b), (0, k_pad - k_total)))

    # VMEM accounting (chip-aware).
    budget = _vmem_budget_bytes()
    w_bytes = 2 * tn * tk * in_bytes                  # double-buffered weight
    o_bytes = 2 * b_pad * tn * 4 + 2 * tn * 4         # f32 output + bias tiles
    x_resident_bytes = 2 * b_pad * k_pad * in_bytes   # x held fully in VMEM
    x_stream_bytes = 2 * b_pad * tk * in_bytes        # x streamed along K
    headroom = 4 << 20

    # Keep x fully resident (DMA'd exactly once) whenever it fits; otherwise
    # stream it along K (weight is streamed exactly once either way).
    x_resident = (w_bytes + o_bytes + x_resident_bytes + headroom) <= budget
    x_bytes = x_resident_bytes if x_resident else x_stream_bytes
    vmem_limit = int(min(budget,
                         max(16 << 20, w_bytes + o_bytes + x_bytes + headroom)))

    grid = (n_pad // tn, k_pad // tk)

    if x_resident:
        x_spec = pl.BlockSpec((b_pad, k_pad), lambda n, k: (0, 0))
    else:
        x_spec = pl.BlockSpec((b_pad, tk), lambda n, k: (0, k))

    y = pl.pallas_call(
        _make_kernel(tk, x_resident),
        out_shape=jax.ShapeDtypeStruct((b_pad, n_pad), jnp.float32),
        grid_spec=pltpu.PrefetchScalarGridSpec(
            num_scalar_prefetch=0,
            grid=grid,
            in_specs=[
                x_spec,                                        # x
                pl.BlockSpec((tk, tn), lambda n, k: (k, n)),   # weight (K, N), streamed once
                pl.BlockSpec((1, tn), lambda n, k: (0, n)),    # bias row
            ],
            out_specs=pl.BlockSpec((b_pad, tn), lambda n, k: (0, n)),
        ),
        compiler_params=pltpu.CompilerParams(
            # outdims tiles parallel (megacore shard on v7x); K is the
            # reduction axis, kept last and marked arbitrary.
            dimension_semantics=("parallel", "arbitrary"),
            vmem_limit_bytes=vmem_limit,
        ),
    )(x_flat, params.w_t, params.bias_row)

    y = y[:b, :outdims]
    if out_dtype != jnp.float32:
        y = y.astype(out_dtype)
    return y


def dense_readout(x, weight, bias, *, tn=2048, tk=4096,
                  compute_dtype=jnp.bfloat16):
    """One-shot convenience wrapper.  In a real model, call
    prepare_dense_readout() once at init and reuse the result per forward."""
    params = prepare_dense_readout(weight, bias, tn=tn, tk=tk,
                                   compute_dtype=compute_dtype)
    return dense_readout_apply(x, params, compute_dtype=compute_dtype)


def dense_readout_ref(x, weight, bias):
    b = x.shape[0]
    x_flat = x.reshape(b, -1)
    y = x_flat @ weight.T
    if bias is not None:
        y = y + bias
    return y


if __name__ == "__main__":
    # Small shapes consistent with the module: in_shape = (C, W, H), outdims.
    B, C, W, H = 2, 4, 16, 16
    OUTDIMS = 32
    INIT_NOISE = 0.001

    key = jax.random.PRNGKey(0)
    kx, kw, kb = jax.random.split(key, 3)

    x = jax.random.normal(kx, (B, C, W, H), dtype=jnp.float32)
    # features ~ Normal(0, init_noise), matching self.features.data.normal_(0, init_noise)
    weight = INIT_NOISE * jax.random.normal(kw, (OUTDIMS, C * W * H), dtype=jnp.float32)
    # Torch leaves `bias` uninitialized; we init deterministically instead.
    bias = 0.01 * jax.random.normal(kb, (OUTDIMS,), dtype=jnp.float32)

    # One-time parameter prep (transpose / cast / pad hoisted out of forward)...
    params = prepare_dense_readout(weight, bias)
    # ... then the per-forward kernel call.
    y = dense_readout_apply(x, params)
    y = jax.block_until_ready(y)
    assert y.shape == (B, OUTDIMS)
    assert y.dtype == x.dtype

    # Kernel-equivalence check: reference computed with the same bf16
    # quantization of the streamed operands (f32 accumulation).
    y_ref_bf16 = dense_readout_ref(
        x.astype(jnp.bfloat16).astype(jnp.float32),
        weight.astype(jnp.bfloat16).astype(jnp.float32),
        bias,
    )
    assert jnp.allclose(y, y_ref_bf16, atol=1e-5, rtol=1e-4), \
        "mismatch vs bf16-cast reference"

    # Sanity check vs the full-f32 module semantics (loose tol for bf16 stream;
    # pass compute_dtype=jnp.float32 for exact f32 semantics).
    y_ref = dense_readout_ref(x, weight, bias)
    assert jnp.allclose(y, y_ref, atol=2e-3, rtol=5e-2), "mismatch vs f32 reference"

    print("KERNEL_OK")
</pallas_src>

<mosaic_0001>
module attributes {stable_mosaic.version = 11 : i64} {
  func.func @kernel(%arg0: i32, %arg1: i32, %arg2: memref<8x1024xbf16, #tpu.memory_space<vmem>>, %arg3: memref<1024x256xbf16, #tpu.memory_space<vmem>>, %arg4: memref<1x256xf32, #tpu.memory_space<vmem>>, %arg5: memref<8x256xf32, #tpu.memory_space<vmem>>) attributes {dimension_semantics = [#tpu.dimension_semantics<parallel>, #tpu.dimension_semantics<arbitrary>], iteration_bounds = array<i64: 1, 1>, scalar_prefetch = 0 : i64, scratch_operands = 0 : i64, tpu.core_type = #tpu.core_type<tc>, window_params = [{pipeline_mode = #tpu.pipeline_mode<synchronous>, transform_indices = @transform_0, window_bounds = array<i64: 8, 1024>}, {transform_indices = @transform_1, window_bounds = array<i64: 1024, 256>}, {transform_indices = @transform_2, window_bounds = array<i64: 1, 256>}, {transform_indices = @transform_3, window_bounds = array<i64: 8, 256>}]} {
    %c0_i32 = arith.constant 0 : i32
    %0 = arith.cmpi eq, %arg1, %c0_i32 : i32
    %1 = arith.extui %0 : i1 to i32
    %c0_i32_0 = arith.constant 0 : i32
    %2 = arith.cmpi ne, %1, %c0_i32_0 : i32
    scf.if %2 {
      %c0_7 = arith.constant 0 : index
      %c0_8 = arith.constant 0 : index
      %12 = vector.load %arg4[%c0_7, %c0_8] : memref<1x256xf32, #tpu.memory_space<vmem>>, vector<1x256xf32>
      %13 = vector.shape_cast %12 : vector<1x256xf32> to vector<1x256xf32>
      %14 = vector.broadcast %13 : vector<1x256xf32> to vector<8x256xf32>
      %c0_9 = arith.constant 0 : index
      %c0_10 = arith.constant 0 : index
      %15 = vector.load %arg5[%c0_9, %c0_10] : memref<8x256xf32, #tpu.memory_space<vmem>>, vector<8x256xf32>
      tpu.vector_store %arg5[%c0_9, %c0_10], %14 {strides = array<i32>} : memref<8x256xf32, #tpu.memory_space<vmem>>, vector<8x256xf32>,
    } else {
    }
    %c1024_i32 = arith.constant 1024 : i32
    %3 = arith.muli %arg1, %c1024_i32 : i32
    %4 = tpu.assume_multiple %3, 1024 : i32
    %c0 = arith.constant 0 : index
    %5 = arith.index_cast %4 : i32 to index
    %6 = vector.load %arg2[%c0, %5] : memref<8x1024xbf16, #tpu.memory_space<vmem>>, vector<8x1024xbf16>
    %c0_1 = arith.constant 0 : index
    %c0_2 = arith.constant 0 : index
    %7 = vector.load %arg5[%c0_1, %c0_2] : memref<8x256xf32, #tpu.memory_space<vmem>>, vector<8x256xf32>
    %c0_3 = arith.constant 0 : index
    %c0_4 = arith.constant 0 : index
    %8 = vector.load %arg3[%c0_3, %c0_4] : memref<1024x256xbf16, #tpu.memory_space<vmem>>, vector<1024x256xbf16>
    %cst = arith.constant dense<0.000000e+00> : vector<8x256xf32>
    %9 = tpu.matmul %6, %8, %cst {dimension_numbers = #tpu.dot_dimension_numbers<[1], [0], [0], [1], [0, 0, 1, 1], [], []>} : vector<8x1024xbf16>, vector<1024x256xbf16>, vector<8x256xf32> -> vector<8x256xf32>
    %10 = arith.addf %7, %9 : vector<8x256xf32>
    %c0_5 = arith.constant 0 : index
    %c0_6 = arith.constant 0 : index
    %11 = vector.load %arg5[%c0_5, %c0_6] : memref<8x256xf32, #tpu.memory_space<vmem>>, vector<8x256xf32>
    tpu.vector_store %arg5[%c0_5, %c0_6], %10 {strides = array<i32>} : memref<8x256xf32, #tpu.memory_space<vmem>>, vector<8x256xf32>,
    return
  }
  func.func @transform_0(%arg0: i32, %arg1: i32) -> (i32, i32) {
    %c0_i32 = arith.constant 0 : i32
    %c0_i32_0 = arith.constant 0 : i32
    %c0_i32_1 = arith.constant 0 : i32
    return %c0_i32, %c0_i32_0 : i32, i32
  }
  func.func @transform_1(%arg0: i32, %arg1: i32) -> (i32, i32) {
    %c0_i32 = arith.constant 0 : i32
    return %arg1, %arg0 : i32, i32
  }
  func.func @transform_2(%arg0: i32, %arg1: i32) -> (i32, i32) {
    %c0_i32 = arith.constant 0 : i32
    %c0_i32_0 = arith.constant 0 : i32
    return %c0_i32, %arg0 : i32, i32
  }
  func.func @transform_3(%arg0: i32, %arg1: i32) -> (i32, i32) {
    %c0_i32 = arith.constant 0 : i32
    %c0_i32_0 = arith.constant 0 : i32
    return %c0_i32, %arg0 : i32, i32
  }
}

</mosaic_0001>

<llo_original>
// kernel: tpu_custom_call.1
$region0: #{tpu_custom_call.1}
  #allocation0 [shape = 'u32[]', space=smem, size = 0x4, offset = 0x4, fixed_abs, tag = 'smem constant byte address 0x4 - core index']
  #allocation1 [shape = 'u32[144,128]{1,0:T(1,128)}', space=vmem, size = 0x12000, scoped, tag = 'internal scratch']
  %s0 = inlined_call_operand.hbm [shape: bf16[8,1024], index: 0, kind: input, shape index: {}]
  %s1 = inlined_call_operand.hbm [shape: bf16[1024,256], index: 1, kind: input, shape index: {}]
  %s2 = inlined_call_operand.vmem [shape: f32[1,256], index: 2, kind: input, shape index: {}]
  %s3 = inlined_call_operand.hbm [shape: f32[8,256], index: 3, kind: output, shape index: {}]
  %s4 = sld [smem:[#allocation0]]
  $region34: #{tpu_custom_call.1} parent=0
    _
  %s6 = ssub.s32 1, %s4
  %s7 = scalar_select 0, %s6, %s4
  $region1: #{tpu_custom_call.1} parent=0
    #allocation2 [shape = 'u8[16384]{0}', space=vmem, size = 0x4000, scoped, tag = 'input window, operand 0, single buffered']
    #allocation3 [shape = 's32[1]{0}', space=sflag, size = 0x4, scoped, tag = 'scoped memory for tpu_custom_call.1']
    #allocation4 [shape = 's32[1]{0}', space=sflag, size = 0x4, scoped, tag = 'scoped memory for tpu_custom_call.1']
    #allocation5 [shape = 'u8[524288]{0}', space=vmem, size = 0x80000, scoped, tag = 'input window, operand 1, single buffered']
    #allocation6 [shape = 's32[1]{0}', space=sflag, size = 0x4, scoped, tag = 'scoped memory for tpu_custom_call.1']
    #allocation7 [shape = 'u8[8192]{0}', space=vmem, size = 0x2000, scoped, tag = 'output window, operand 0, single buffered']
    %8 = vsyncpa [#allocation3], 0
    %9 = vsyncpa [#allocation6], 0
    %10 = vsyncpa [#allocation4], 0
    // Predicated region
    $region2: #{tpu_custom_call.1} parent=1 // pred_check
      _
    $region3: #{tpu_custom_call.1} parent=1 // pred_check_branch
      %12 = sbr.rel (0) target = $region5
    $region4: #{tpu_custom_call.1} parent=1 // pred_region
      %s14 = ssub.s32 512, 512
      %15 = vsyncadd [#allocation3], %s14
      %s17 = sshll.u32 [#allocation2], 4
      %s18 = int_to_ptr.vmem [resolvable:$true] %s17
      %20 = dma.hbm_to_vmem [thread:$0]  %s0, 512, %s18, [#allocation3]
    $region5: #{tpu_custom_call.1} parent=1 // pred_fallthru
      _
    // Predicated region
    $region6: #{tpu_custom_call.1} parent=1 // pred_check
      _
    $region7: #{tpu_custom_call.1} parent=1 // pred_check_branch
      %22 = sbr.rel (0) target = $region9
    $region8: #{tpu_custom_call.1} parent=1 // pred_region
      %s24 = ssub.s32 16384, 16384
      %25 = vsyncadd [#allocation6], %s24
      %s26 = sshll.u32 [#allocation5], 4
      %s27 = int_to_ptr.vmem [resolvable:$true] %s26
      %32 = dma.hbm_to_vmem [thread:$0]  %s1, 16384, %s27, [#allocation6], 128, 128, 8
    $region9: #{tpu_custom_call.1} parent=1 // pred_fallthru
      _
    // Predicated region
    $region10: #{tpu_custom_call.1} parent=1 // pred_check
      _
    $region11: #{tpu_custom_call.1} parent=1 // pred_check_branch
      %34 = sbr.rel (0) target = $region13
    $region12: #{tpu_custom_call.1} parent=1 // pred_region
      _
    $region13: #{tpu_custom_call.1} parent=1 // pred_fallthru
      _
    // Predicated region
    $region14: #{tpu_custom_call.1} parent=1 // pred_check
      _
    $region15: #{tpu_custom_call.1} parent=1 // pred_check_branch
      %36 = sbr.rel (0) target = $region17
    $region16: #{tpu_custom_call.1} parent=1 // pred_region
      %37 = dma.done [#allocation3], 512
    $region17: #{tpu_custom_call.1} parent=1 // pred_fallthru
      _
    // Predicated region
    $region18: #{tpu_custom_call.1} parent=1 // pred_check
      _
    $region19: #{tpu_custom_call.1} parent=1 // pred_check_branch
      %39 = sbr.rel (0) target = $region21
    $region20: #{tpu_custom_call.1} parent=1 // pred_region
      %40 = dma.done [#allocation6], 16384
    $region21: #{tpu_custom_call.1} parent=1 // pred_fallthru
      _
    %p41 = scmp.eq.s32.totalorder 0, 0
    // Predicated region
    $region22: #{tpu_custom_call.1} parent=1 // pred_check
      %p42 = pneg %p41
    $region23: #{tpu_custom_call.1} parent=1 // pred_check_branch
      %44 = sbr.rel (%p42) target = $region25
    $region24: #{tpu_custom_call.1} parent=1 // pred_region
      %v45 = vld [vmem:[%s2] sm:$0x3]
      %v47 = vlaneseq
      %v48 = vshrl.u32 %v47, 7
      %v49 = vsub.s32 0, %v48
      %v50 = vrot.slane %v45, %v49
      %v51 = vlaneseq
      %v52 = vshrl.u32 %v51, 7
      %v53 = vsub.s32 1, %v52
      %v54 = vrot.slane %v45, %v53
      %57 = vst [vmem:[#allocation7] sm:$0xff] %v50
      %58 = vst [vmem:[#allocation7 + $0x8] sm:$0xff] %v54
    $region25: #{tpu_custom_call.1} parent=1 // pred_fallthru
      _
    %s59 = smul.u32 0, 1024
    %s60 = sshra.s32 %s59, 7
    %s61 = sand.u32 %s59, 127
    %s62 = smul.addr %s60, 4
    %s63 = scalar_lea.vmem [#allocation2], %s62
    %v64 = vld [vmem:[%s63] sm:$0xff]
    %v65 = vld [vmem:[%s63 + $0x8] sm:$0xff]
    %v66 = vld [vmem:[%s63 + $0x10] sm:$0xff]
    %v67 = vld [vmem:[%s63 + $0x18] sm:$0xff]
    %v68 = vld [vmem:[#allocation7] sm:$0xff]
    %v69 = vld [vmem:[#allocation7 + $0x8] sm:$0xff]
    %v70 = vld [vmem:[#allocation5] sm:$0xff]
    %v71 = vld [vmem:[#allocation5 + $0x8] sm:$0xff]
    %v72 = vld [vmem:[#allocation5 + $0x10] sm:$0xff]
    %v73 = vld [vmem:[#allocation5 + $0x18] sm:$0xff]
    %v74 = vld [vmem:[#allocation5 + $0x20] sm:$0xff]
    %v75 = vld [vmem:[#allocation5 + $0x28] sm:$0xff]
    %v76 = vld [vmem:[#allocation5 + $0x30] sm:$0xff]
    %v77 = vld [vmem:[#allocation5 + $0x38] sm:$0xff]
    %v78 = vld [vmem:[#allocation5 + $0x40] sm:$0xff]
    %v79 = vld [vmem:[#allocation5 + $0x48] sm:$0xff]
    %v80 = vld [vmem:[#allocation5 + $0x50] sm:$0xff]
    %v81 = vld [vmem:[#allocation5 + $0x58] sm:$0xff]
    %v82 = vld [vmem:[#allocation5 + $0x60] sm:$0xff]
    %v83 = vld [vmem:[#allocation5 + $0x68] sm:$0xff]
    %v84 = vld [vmem:[#allocation5 + $0x70] sm:$0xff]
    %v85 = vld [vmem:[#allocation5 + $0x78] sm:$0xff]
    %v86 = vld [vmem:[#allocation5 + $0x80] sm:$0xff]
    %v87 = vld [vmem:[#allocation5 + $0x88] sm:$0xff]
    %v88 = vld [vmem:[#allocation5 + $0x90] sm:$0xff]
    %v89 = vld [vmem:[#allocation5 + $0x98] sm:$0xff]
    %v90 = vld [vmem:[#allocation5 + $0xa0] sm:$0xff]
    %v91 = vld [vmem:[#allocation5 + $0xa8] sm:$0xff]
    %v92 = vld [vmem:[#allocation5 + $0xb0] sm:$0xff]
    %v93 = vld [vmem:[#allocation5 + $0xb8] sm:$0xff]
    %v94 = vld [vmem:[#allocation5 + $0xc0] sm:$0xff]
    %v95 = vld [vmem:[#allocation5 + $0xc8] sm:$0xff]
    %v96 = vld [vmem:[#allocation5 + $0xd0] sm:$0xff]
    %v97 = vld [vmem:[#allocation5 + $0xd8] sm:$0xff]
    %v98 = vld [vmem:[#allocation5 + $0xe0] sm:$0xff]
    %v99 = vld [vmem:[#allocation5 + $0xe8] sm:$0xff]
    %v100 = vld [vmem:[#allocation5 + $0xf0] sm:$0xff]
    %v101 = vld [vmem:[#allocation5 + $0xf8] sm:$0xff]
    %v102 = vld [vmem:[#allocation5 + $0x100] sm:$0xff]
    %v103 = vld [vmem:[#allocation5 + $0x108] sm:$0xff]
    %v104 = vld [vmem:[#allocation5 + $0x110] sm:$0xff]
    %v105 = vld [vmem:[#allocation5 + $0x118] sm:$0xff]
    %v106 = vld [vmem:[#allocation5 + $0x120] sm:$0xff]
    %v107 = vld [vmem:[#allocation5 + $0x128] sm:$0xff]
    %v108 = vld [vmem:[#allocation5 + $0x130] sm:$0xff]
    %v109 = vld [vmem:[#allocation5 + $0x138] sm:$0xff]
    %v110 = vld [vmem:[#allocation5 + $0x140] sm:$0xff]
    %v111 = vld [vmem:[#allocation5 + $0x148] sm:$0xff]
    %v112 = vld [vmem:[#allocation5 + $0x150] sm:$0xff]
    %v113 = vld [vmem:[#allocation5 + $0x158] sm:$0xff]
    %v114 = vld [vmem:[#allocation5 + $0x160] sm:$0xff]
    %v115 = vld [vmem:[#allocation5 + $0x168] sm:$0xff]
    %v116 = vld [vmem:[#allocation5 + $0x170] sm:$0xff]
    %v117 = vld [vmem:[#allocation5 + $0x178] sm:$0xff]
    %v118 = vld [vmem:[#allocation5 + $0x180] sm:$0xff]
    %v119 = vld [vmem:[#allocation5 + $0x188] sm:$0xff]
    %v120 = vld [vmem:[#allocation5 + $0x190] sm:$0xff]
    %v121 = vld [vmem:[#allocation5 + $0x198] sm:$0xff]
    %v122 = vld [vmem:[#allocation5 + $0x1a0] sm:$0xff]
    %v123 = vld [vmem:[#allocation5 + $0x1a8] sm:$0xff]
    %v124 = vld [vmem:[#allocation5 + $0x1b0] sm:$0xff]
    %v125 = vld [vmem:[#allocation5 + $0x1b8] sm:$0xff]
    %v126 = vld [vmem:[#allocation5 + $0x1c0] sm:$0xff]
    %v127 = vld [vmem:[#allocation5 + $0x1c8] sm:$0xff]
    %v128 = vld [vmem:[#allocation5 + $0x1d0] sm:$0xff]
    %v129 = vld [vmem:[#allocation5 + $0x1d8] sm:$0xff]
    %v130 = vld [vmem:[#allocation5 + $0x1e0] sm:$0xff]
    %v131 = vld [vmem:[#allocation5 + $0x1e8] sm:$0xff]
    %v132 = vld [vmem:[#allocation5 + $0x1f0] sm:$0xff]
    %v133 = vld [vmem:[#allocation5 + $0x1f8] sm:$0xff]
    %v134 = vld [vmem:[#allocation5 + $0x200] sm:$0xff]
    %v135 = vld [vmem:[#allocation5 + $0x208] sm:$0xff]
    %v136 = vld [vmem:[#allocation5 + $0x210] sm:$0xff]
    %v137 = vld [vmem:[#allocation5 + $0x218] sm:$0xff]
    %v138 = vld [vmem:[#allocation5 + $0x220] sm:$0xff]
    %v139 = vld [vmem:[#allocation5 + $0x228] sm:$0xff]
    %v140 = vld [vmem:[#allocation5 + $0x230] sm:$0xff]
    %v141 = vld [vmem:[#allocation5 + $0x238] sm:$0xff]
    %v142 = vld [vmem:[#allocation5 + $0x240] sm:$0xff]
    %v143 = vld [vmem:[#allocation5 + $0x248] sm:$0xff]
    %v144 = vld [vmem:[#allocation5 + $0x250] sm:$0xff]
    %v145 = vld [vmem:[#allocation5 + $0x258] sm:$0xff]
    %v146 = vld [vmem:[#allocation5 + $0x260] sm:$0xff]
    %v147 = vld [vmem:[#allocation5 + $0x268] sm:$0xff]
    %v148 = vld [vmem:[#allocation5 + $0x270] sm:$0xff]
    %v149 = vld [vmem:[#allocation5 + $0x278] sm:$0xff]
    %v150 = vld [vmem:[#allocation5 + $0x280] sm:$0xff]
    %v151 = vld [vmem:[#allocation5 + $0x288] sm:$0xff]
    %v152 = vld [vmem:[#allocation5 + $0x290] sm:$0xff]
    %v153 = vld [vmem:[#allocation5 + $0x298] sm:$0xff]
    %v154 = vld [vmem:[#allocation5 + $0x2a0] sm:$0xff]
    %v155 = vld [vmem:[#allocation5 + $0x2a8] sm:$0xff]
    %v156 = vld [vmem:[#allocation5 + $0x2b0] sm:$0xff]
    %v157 = vld [vmem:[#allocation5 + $0x2b8] sm:$0xff]
    %v158 = vld [vmem:[#allocation5 + $0x2c0] sm:$0xff]
    %v159 = vld [vmem:[#allocation5 + $0x2c8] sm:$0xff]
    %v160 = vld [vmem:[#allocation5 + $0x2d0] sm:$0xff]
    %v161 = vld [vmem:[#allocation5 + $0x2d8] sm:$0xff]
    %v162 = vld [vmem:[#allocation5 + $0x2e0] sm:$0xff]
    %v163 = vld [vmem:[#allocation5 + $0x2e8] sm:$0xff]
    %v164 = vld [vmem:[#allocation5 + $0x2f0] sm:$0xff]
    %v165 = vld [vmem:[#allocation5 + $0x2f8] sm:$0xff]
    %v166 = vld [vmem:[#allocation5 + $0x300] sm:$0xff]
    %v167 = vld [vmem:[#allocation5 + $0x308] sm:$0xff]
    %v168 = vld [vmem:[#allocation5 + $0x310] sm:$0xff]
    %v169 = vld [vmem:[#allocation5 + $0x318] sm:$0xff]
    %v170 = vld [vmem:[#allocation5 + $0x320] sm:$0xff]
    %v171 = vld [vmem:[#allocation5 + $0x328] sm:$0xff]
    %v172 = vld [vmem:[#allocation5 + $0x330] sm:$0xff]
    %v173 = vld [vmem:[#allocation5 + $0x338] sm:$0xff]
    %v174 = vld [vmem:[#allocation5 + $0x340] sm:$0xff]
    %v175 = vld [vmem:[#allocation5 + $0x348] sm:$0xff]
    %v176 = vld [vmem:[#allocation5 + $0x350] sm:$0xff]
    %v177 = vld [vmem:[#allocation5 + $0x358] sm:$0xff]
    %v178 = vld [vmem:[#allocation5 + $0x360] sm:$0xff]
    %v179 = vld [vmem:[#allocation5 + $0x368] sm:$0xff]
    %v180 = vld [vmem:[#allocation5 + $0x370] sm:$0xff]
    %v181 = vld [vmem:[#allocation5 + $0x378] sm:$0xff]
    %v182 = vld [vmem:[#allocation5 + $0x380] sm:$0xff]
    %v183 = vld [vmem:[#allocation5 + $0x388] sm:$0xff]
    %v184 = vld [vmem:[#allocation5 + $0x390] sm:$0xff]
    %v185 = vld [vmem:[#allocation5 + $0x398] sm:$0xff]
    %v186 = vld [vmem:[#allocation5 + $0x3a0] sm:$0xff]
    %v187 = vld [vmem:[#allocation5 + $0x3a8] sm:$0xff]
    %v188 = vld [vmem:[#allocation5 + $0x3b0] sm:$0xff]
    %v189 = vld [vmem:[#allocation5 + $0x3b8] sm:$0xff]
    %v190 = vld [vmem:[#allocation5 + $0x3c0] sm:$0xff]
    %v191 = vld [vmem:[#allocation5 + $0x3c8] sm:$0xff]
    %v192 = vld [vmem:[#allocation5 + $0x3d0] sm:$0xff]
    %v193 = vld [vmem:[#allocation5 + $0x3d8] sm:$0xff]
    %v194 = vld [vmem:[#allocation5 + $0x3e0] sm:$0xff]
    %v195 = vld [vmem:[#allocation5 + $0x3e8] sm:$0xff]
    %v196 = vld [vmem:[#allocation5 + $0x3f0] sm:$0xff]
    %v197 = vld [vmem:[#allocation5 + $0x3f8] sm:$0xff]
    %v202 = vunpack.c.l.b16 %v64
    %v203 = vunpack.c.h.b16 %v64
    %v204 = vunpack.c.l.b16 %v65
    %v205 = vunpack.c.h.b16 %v65
    %v206 = vunpack.c.l.b16 %v66
    %v207 = vunpack.c.h.b16 %v66
    %v208 = vunpack.c.l.b16 %v67
    %v209 = vunpack.c.h.b16 %v67
    %v210 = vpack.c.b16 %v202, %v202
    %v211 = vpack.c.b16 %v203, %v203
    %v212 = vpack.c.b16 %v204, %v204
    %v213 = vpack.c.b16 %v205, %v205
    %v214 = vpack.c.b16 %v206, %v206
    %v215 = vpack.c.b16 %v207, %v207
    %v216 = vpack.c.b16 %v208, %v208
    %v217 = vpack.c.b16 %v209, %v209
    %v354 = vunpack.c.l.b16 %v70
    %v355 = vunpack.c.h.b16 %v70
    %v356 = vunpack.c.l.b16 %v71
    %v357 = vunpack.c.h.b16 %v71
    %v358 = vunpack.c.l.b16 %v72
    %v359 = vunpack.c.h.b16 %v72
    %v360 = vunpack.c.l.b16 %v73
    %v361 = vunpack.c.h.b16 %v73
    %v362 = vunpack.c.l.b16 %v74
    %v363 = vunpack.c.h.b16 %v74
    %v364 = vunpack.c.l.b16 %v75
    %v365 = vunpack.c.h.b16 %v75
    %v366 = vunpack.c.l.b16 %v76
    %v367 = vunpack.c.h.b16 %v76
    %v368 = vunpack.c.l.b16 %v77
    %v369 = vunpack.c.h.b16 %v77
    %v370 = vunpack.c.l.b16 %v78
    %v371 = vunpack.c.h.b16 %v78
    %v372 = vunpack.c.l.b16 %v79
    %v373 = vunpack.c.h.b16 %v79
    %v374 = vunpack.c.l.b16 %v80
    %v375 = vunpack.c.h.b16 %v80
    %v376 = vunpack.c.l.b16 %v81
    %v377 = vunpack.c.h.b16 %v81
    %v378 = vunpack.c.l.b16 %v82
    %v379 = vunpack.c.h.b16 %v82
    %v380 = vunpack.c.l.b16 %v83
    %v381 = vunpack.c.h.b16 %v83
    %v382 = vunpack.c.l.b16 %v84
    %v383 = vunpack.c.h.b16 %v84
    %v384 = vunpack.c.l.b16 %v85
    %v385 = vunpack.c.h.b16 %v85
    %v386 = vunpack.c.l.b16 %v86
    %v387 = vunpack.c.h.b16 %v86
    %v388 = vunpack.c.l.b16 %v87
    %v389 = vunpack.c.h.b16 %v87
    %v390 = vunpack.c.l.b16 %v88
    %v391 = vunpack.c.h.b16 %v88
    %v392 = vunpack.c.l.b16 %v89
    %v393 = vunpack.c.h.b16 %v89
    %v394 = vunpack.c.l.b16 %v90
    %v395 = vunpack.c.h.b16 %v90
    %v396 = vunpack.c.l.b16 %v91
    %v397 = vunpack.c.h.b16 %v91
    %v398 = vunpack.c.l.b16 %v92
    %v399 = vunpack.c.h.b16 %v92
    %v400 = vunpack.c.l.b16 %v93
    %v401 = vunpack.c.h.b16 %v93
    %v402 = vunpack.c.l.b16 %v94
    %v403 = vunpack.c.h.b16 %v94
    %v404 = vunpack.c.l.b16 %v95
    %v405 = vunpack.c.h.b16 %v95
    %v406 = vunpack.c.l.b16 %v96
    %v407 = vunpack.c.h.b16 %v96
    %v408 = vunpack.c.l.b16 %v97
    %v409 = vunpack.c.h.b16 %v97
    %v410 = vunpack.c.l.b16 %v98
    %v411 = vunpack.c.h.b16 %v98
    %v412 = vunpack.c.l.b16 %v99
    %v413 = vunpack.c.h.b16 %v99
    %v414 = vunpack.c.l.b16 %v100
    %v415 = vunpack.c.h.b16 %v100
    %v416 = vunpack.c.l.b16 %v101
    %v417 = vunpack.c.h.b16 %v101
    %v418 = vunpack.c.l.b16 %v102
    %v419 = vunpack.c.h.b16 %v102
    %v420 = vunpack.c.l.b16 %v103
    %v421 = vunpack.c.h.b16 %v103
    %v422 = vunpack.c.l.b16 %v104
    %v423 = vunpack.c.h.b16 %v104
    %v424 = vunpack.c.l.b16 %v105
    %v425 = vunpack.c.h.b16 %v105
    %v426 = vunpack.c.l.b16 %v106
    %v427 = vunpack.c.h.b16 %v106
    %v428 = vunpack.c.l.b16 %v107
    %v429 = vunpack.c.h.b16 %v107
    %v430 = vunpack.c.l.b16 %v108
    %v431 = vunpack.c.h.b16 %v108
    %v432 = vunpack.c.l.b16 %v109
    %v433 = vunpack.c.h.b16 %v109
    %v434 = vunpack.c.l.b16 %v110
    %v435 = vunpack.c.h.b16 %v110
    %v436 = vunpack.c.l.b16 %v111
    %v437 = vunpack.c.h.b16 %v111
    %v438 = vunpack.c.l.b16 %v112
    %v439 = vunpack.c.h.b16 %v112
    %v440 = vunpack.c.l.b16 %v113
    %v441 = vunpack.c.h.b16 %v113
    %v442 = vunpack.c.l.b16 %v114
    %v443 = vunpack.c.h.b16 %v114
    %v444 = vunpack.c.l.b16 %v115
    %v445 = vunpack.c.h.b16 %v115
    %v446 = vunpack.c.l.b16 %v116
    %v447 = vunpack.c.h.b16 %v116
    %v448 = vunpack.c.l.b16 %v117
    %v449 = vunpack.c.h.b16 %v117
    %v450 = vunpack.c.l.b16 %v118
    %v451 = vunpack.c.h.b16 %v118
    %v452 = vunpack.c.l.b16 %v119
    %v453 = vunpack.c.h.b16 %v119
    %v454 = vunpack.c.l.b16 %v120
    %v455 = vunpack.c.h.b16 %v120
    %v456 = vunpack.c.l.b16 %v121
    %v457 = vunpack.c.h.b16 %v121
    %v458 = vunpack.c.l.b16 %v122
    %v459 = vunpack.c.h.b16 %v122
    %v460 = vunpack.c.l.b16 %v123
    %v461 = vunpack.c.h.b16 %v123
    %v462 = vunpack.c.l.b16 %v124
    %v463 = vunpack.c.h.b16 %v124
    %v464 = vunpack.c.l.b16 %v125
    %v465 = vunpack.c.h.b16 %v125
    %v466 = vunpack.c.l.b16 %v126
    %v467 = vunpack.c.h.b16 %v126
    %v468 = vunpack.c.l.b16 %v127
    %v469 = vunpack.c.h.b16 %v127
    %v470 = vunpack.c.l.b16 %v128
    %v471 = vunpack.c.h.b16 %v128
    %v472 = vunpack.c.l.b16 %v129
    %v473 = vunpack.c.h.b16 %v129
    %v474 = vunpack.c.l.b16 %v130
    %v475 = vunpack.c.h.b16 %v130
    %v476 = vunpack.c.l.b16 %v131
    %v477 = vunpack.c.h.b16 %v131
    %v478 = vunpack.c.l.b16 %v132
    %v479 = vunpack.c.h.b16 %v132
    %v480 = vunpack.c.l.b16 %v133
    %v481 = vunpack.c.h.b16 %v133
    %v482 = vunpack.c.l.b16 %v134
    %v483 = vunpack.c.h.b16 %v134
    %v484 = vunpack.c.l.b16 %v135
    %v485 = vunpack.c.h.b16 %v135
    %v486 = vunpack.c.l.b16 %v136
    %v487 = vunpack.c.h.b16 %v136
    %v488 = vunpack.c.l.b16 %v137
    %v489 = vunpack.c.h.b16 %v137
    %v490 = vunpack.c.l.b16 %v138
    %v491 = vunpack.c.h.b16 %v138
    %v492 = vunpack.c.l.b16 %v139
    %v493 = vunpack.c.h.b16 %v139
    %v494 = vunpack.c.l.b16 %v140
    %v495 = vunpack.c.h.b16 %v140
    %v496 = vunpack.c.l.b16 %v141
    %v497 = vunpack.c.h.b16 %v141
    %v498 = vunpack.c.l.b16 %v142
    %v499 = vunpack.c.h.b16 %v142
    %v500 = vunpack.c.l.b16 %v143
    %v501 = vunpack.c.h.b16 %v143
    %v502 = vunpack.c.l.b16 %v144
    %v503 = vunpack.c.h.b16 %v144
    %v504 = vunpack.c.l.b16 %v145
    %v505 = vunpack.c.h.b16 %v145
    %v506 = vunpack.c.l.b16 %v146
    %v507 = vunpack.c.h.b16 %v146
    %v508 = vunpack.c.l.b16 %v147
    %v509 = vunpack.c.h.b16 %v147
    %v510 = vunpack.c.l.b16 %v148
    %v511 = vunpack.c.h.b16 %v148
    %v512 = vunpack.c.l.b16 %v149
    %v513 = vunpack.c.h.b16 %v149
    %v514 = vunpack.c.l.b16 %v150
    %v515 = vunpack.c.h.b16 %v150
    %v516 = vunpack.c.l.b16 %v151
    %v517 = vunpack.c.h.b16 %v151
    %v518 = vunpack.c.l.b16 %v152
    %v519 = vunpack.c.h.b16 %v152
    %v520 = vunpack.c.l.b16 %v153
    %v521 = vunpack.c.h.b16 %v153
    %v522 = vunpack.c.l.b16 %v154
    %v523 = vunpack.c.h.b16 %v154
    %v524 = vunpack.c.l.b16 %v155
    %v525 = vunpack.c.h.b16 %v155
    %v526 = vunpack.c.l.b16 %v156
    %v527 = vunpack.c.h.b16 %v156
    %v528 = vunpack.c.l.b16 %v157
    %v529 = vunpack.c.h.b16 %v157
    %v530 = vunpack.c.l.b16 %v158
    %v531 = vunpack.c.h.b16 %v158
    %v532 = vunpack.c.l.b16 %v159
    %v533 = vunpack.c.h.b16 %v159
    %v534 = vunpack.c.l.b16 %v160
    %v535 = vunpack.c.h.b16 %v160
    %v536 = vunpack.c.l.b16 %v161
    %v537 = vunpack.c.h.b16 %v161
    %v538 = vunpack.c.l.b16 %v162
    %v539 = vunpack.c.h.b16 %v162
    %v540 = vunpack.c.l.b16 %v163
    %v541 = vunpack.c.h.b16 %v163
    %v542 = vunpack.c.l.b16 %v164
    %v543 = vunpack.c.h.b16 %v164
    %v544 = vunpack.c.l.b16 %v165
    %v545 = vunpack.c.h.b16 %v165
    %v546 = vunpack.c.l.b16 %v166
    %v547 = vunpack.c.h.b16 %v166
    %v548 = vunpack.c.l.b16 %v167
    %v549 = vunpack.c.h.b16 %v167
    %v550 = vunpack.c.l.b16 %v168
    %v551 = vunpack.c.h.b16 %v168
    %v552 = vunpack.c.l.b16 %v169
    %v553 = vunpack.c.h.b16 %v169
    %v554 = vunpack.c.l.b16 %v170
    %v555 = vunpack.c.h.b16 %v170
    %v556 = vunpack.c.l.b16 %v171
    %v557 = vunpack.c.h.b16 %v171
    %v558 = vunpack.c.l.b16 %v172
    %v559 = vunpack.c.h.b16 %v172
    %v560 = vunpack.c.l.b16 %v173
    %v561 = vunpack.c.h.b16 %v173
    %v562 = vunpack.c.l.b16 %v174
    %v563 = vunpack.c.h.b16 %v174
    %v564 = vunpack.c.l.b16 %v175
    %v565 = vunpack.c.h.b16 %v175
    %v566 = vunpack.c.l.b16 %v176
    %v567 = vunpack.c.h.b16 %v176
    %v568 = vunpack.c.l.b16 %v177
    %v569 = vunpack.c.h.b16 %v177
    %v570 = vunpack.c.l.b16 %v178
    %v571 = vunpack.c.h.b16 %v178
    %v572 = vunpack.c.l.b16 %v179
    %v573 = vunpack.c.h.b16 %v179
    %v574 = vunpack.c.l.b16 %v180
    %v575 = vunpack.c.h.b16 %v180
    %v576 = vunpack.c.l.b16 %v181
    %v577 = vunpack.c.h.b16 %v181
    %v578 = vunpack.c.l.b16 %v182
    %v579 = vunpack.c.h.b16 %v182
    %v580 = vunpack.c.l.b16 %v183
    %v581 = vunpack.c.h.b16 %v183
    %v582 = vunpack.c.l.b16 %v184
    %v583 = vunpack.c.h.b16 %v184
    %v584 = vunpack.c.l.b16 %v185
    %v585 = vunpack.c.h.b16 %v185
    %v586 = vunpack.c.l.b16 %v186
    %v587 = vunpack.c.h.b16 %v186
    %v588 = vunpack.c.l.b16 %v187
    %v589 = vunpack.c.h.b16 %v187
    %v590 = vunpack.c.l.b16 %v188
    %v591 = vunpack.c.h.b16 %v188
    %v592 = vunpack.c.l.b16 %v189
    %v593 = vunpack.c.h.b16 %v189
    %v594 = vunpack.c.l.b16 %v190
    %v595 = vunpack.c.h.b16 %v190
    %v596 = vunpack.c.l.b16 %v191
    %v597 = vunpack.c.h.b16 %v191
    %v598 = vunpack.c.l.b16 %v192
    %v599 = vunpack.c.h.b16 %v192
    %v600 = vunpack.c.l.b16 %v193
    %v601 = vunpack.c.h.b16 %v193
    %v602 = vunpack.c.l.b16 %v194
    %v603 = vunpack.c.h.b16 %v194
    %v604 = vunpack.c.l.b16 %v195
    %v605 = vunpack.c.h.b16 %v195
    %v606 = vunpack.c.l.b16 %v196
    %v607 = vunpack.c.h.b16 %v196
    %v608 = vunpack.c.l.b16 %v197
    %v609 = vunpack.c.h.b16 %v197
    %v610 = vpack.c.b16 %v356, %v354
    %v611 = vpack.c.b16 %v357, %v355
    %v612 = vpack.c.b16 %v360, %v358
    %v613 = vpack.c.b16 %v361, %v359
    %v614 = vpack.c.b16 %v364, %v362
    %v615 = vpack.c.b16 %v365, %v363
    %v616 = vpack.c.b16 %v368, %v366
    %v617 = vpack.c.b16 %v369, %v367
    %v618 = vpack.c.b16 %v372, %v370
    %v619 = vpack.c.b16 %v373, %v371
    %v620 = vpack.c.b16 %v376, %v374
    %v621 = vpack.c.b16 %v377, %v375
    %v622 = vpack.c.b16 %v380, %v378
    %v623 = vpack.c.b16 %v381, %v379
    %v624 = vpack.c.b16 %v384, %v382
    %v625 = vpack.c.b16 %v385, %v383
    %v626 = vpack.c.b16 %v388, %v386
    %v627 = vpack.c.b16 %v389, %v387
    %v628 = vpack.c.b16 %v392, %v390
    %v629 = vpack.c.b16 %v393, %v391
    %v630 = vpack.c.b16 %v396, %v394
    %v631 = vpack.c.b16 %v397, %v395
    %v632 = vpack.c.b16 %v400, %v398
    %v633 = vpack.c.b16 %v401, %v399
    %v634 = vpack.c.b16 %v404, %v402
    %v635 = vpack.c.b16 %v405, %v403
    %v636 = vpack.c.b16 %v408, %v406
    %v637 = vpack.c.b16 %v409, %v407
    %v638 = vpack.c.b16 %v412, %v410
    %v639 = vpack.c.b16 %v413, %v411
    %v640 = vpack.c.b16 %v416, %v414
    %v641 = vpack.c.b16 %v417, %v415
    %v642 = vpack.c.b16 %v420, %v418
    %v643 = vpack.c.b16 %v421, %v419
    %v644 = vpack.c.b16 %v424, %v422
    %v645 = vpack.c.b16 %v425, %v423
    %v646 = vpack.c.b16 %v428, %v426
    %v647 = vpack.c.b16 %v429, %v427
    %v648 = vpack.c.b16 %v432, %v430
    %v649 = vpack.c.b16 %v433, %v431
    %v650 = vpack.c.b16 %v436, %v434
    %v651 = vpack.c.b16 %v437, %v435
    %v652 = vpack.c.b16 %v440, %v438
    %v653 = vpack.c.b16 %v441, %v439
    %v654 = vpack.c.b16 %v444, %v442
    %v655 = vpack.c.b16 %v445, %v443
    %v656 = vpack.c.b16 %v448, %v446
    %v657 = vpack.c.b16 %v449, %v447
    %v658 = vpack.c.b16 %v452, %v450
    %v659 = vpack.c.b16 %v453, %v451
    %v660 = vpack.c.b16 %v456, %v454
    %v661 = vpack.c.b16 %v457, %v455
    %v662 = vpack.c.b16 %v460, %v458
    %v663 = vpack.c.b16 %v461, %v459
    %v664 = vpack.c.b16 %v464, %v462
    %v665 = vpack.c.b16 %v465, %v463
    %v666 = vpack.c.b16 %v468, %v466
    %v667 = vpack.c.b16 %v469, %v467
    %v668 = vpack.c.b16 %v472, %v470
    %v669 = vpack.c.b16 %v473, %v471
    %v670 = vpack.c.b16 %v476, %v474
    %v671 = vpack.c.b16 %v477, %v475
    %v672 = vpack.c.b16 %v480, %v478
    %v673 = vpack.c.b16 %v481, %v479
    %v674 = vpack.c.b16 %v484, %v482
    %v675 = vpack.c.b16 %v485, %v483
    %v676 = vpack.c.b16 %v488, %v486
    %v677 = vpack.c.b16 %v489, %v487
    %v678 = vpack.c.b16 %v492, %v490
    %v679 = vpack.c.b16 %v493, %v491
    %v680 = vpack.c.b16 %v496, %v494
    %v681 = vpack.c.b16 %v497, %v495
    %v682 = vpack.c.b16 %v500, %v498
    %v683 = vpack.c.b16 %v501, %v499
    %v684 = vpack.c.b16 %v504, %v502
    %v685 = vpack.c.b16 %v505, %v503
    %v686 = vpack.c.b16 %v508, %v506
    %v687 = vpack.c.b16 %v509, %v507
    %v688 = vpack.c.b16 %v512, %v510
    %v689 = vpack.c.b16 %v513, %v511
    %v690 = vpack.c.b16 %v516, %v514
    %v691 = vpack.c.b16 %v517, %v515
    %v692 = vpack.c.b16 %v520, %v518
    %v693 = vpack.c.b16 %v521, %v519
    %v694 = vpack.c.b16 %v524, %v522
    %v695 = vpack.c.b16 %v525, %v523
    %v696 = vpack.c.b16 %v528, %v526
    %v697 = vpack.c.b16 %v529, %v527
    %v698 = vpack.c.b16 %v532, %v530
    %v699 = vpack.c.b16 %v533, %v531
    %v700 = vpack.c.b16 %v536, %v534
    %v701 = vpack.c.b16 %v537, %v535
    %v702 = vpack.c.b16 %v540, %v538
    %v703 = vpack.c.b16 %v541, %v539
    %v704 = vpack.c.b16 %v544, %v542
    %v705 = vpack.c.b16 %v545, %v543
    %v706 = vpack.c.b16 %v548, %v546
    %v707 = vpack.c.b16 %v549, %v547
    %v708 = vpack.c.b16 %v552, %v550
    %v709 = vpack.c.b16 %v553, %v551
    %v710 = vpack.c.b16 %v556, %v554
    %v711 = vpack.c.b16 %v557, %v555
    %v712 = vpack.c.b16 %v560, %v558
    %v713 = vpack.c.b16 %v561, %v559
    %v714 = vpack.c.b16 %v564, %v562
    %v715 = vpack.c.b16 %v565, %v563
    %v716 = vpack.c.b16 %v568, %v566
    %v717 = vpack.c.b16 %v569, %v567
    %v718 = vpack.c.b16 %v572, %v570
    %v719 = vpack.c.b16 %v573, %v571
    %v720 = vpack.c.b16 %v576, %v574
    %v721 = vpack.c.b16 %v577, %v575
    %v722 = vpack.c.b16 %v580, %v578
    %v723 = vpack.c.b16 %v581, %v579
    %v724 = vpack.c.b16 %v584, %v582
    %v725 = vpack.c.b16 %v585, %v583
    %v726 = vpack.c.b16 %v588, %v586
    %v727 = vpack.c.b16 %v589, %v587
    %v728 = vpack.c.b16 %v592, %v590
    %v729 = vpack.c.b16 %v593, %v591
    %v730 = vpack.c.b16 %v596, %v594
    %v731 = vpack.c.b16 %v597, %v595
    %v732 = vpack.c.b16 %v600, %v598
    %v733 = vpack.c.b16 %v601, %v599
    %v734 = vpack.c.b16 %v604, %v602
    %v735 = vpack.c.b16 %v605, %v603
    %v736 = vpack.c.b16 %v608, %v606
    %v737 = vpack.c.b16 %v609, %v607
    %866 = vmatprep.subr.bf16.mxu0 %v611
    %867 = vmatpush1.bf16.msra.mxu0 %v610
    %868 = vmatprep.subr.bf16.mxu0 %v613
    %869 = vmatpush1.bf16.msra.mxu0 %v612
    %870 = vmatprep.subr.bf16.mxu0 %v615
    %871 = vmatpush1.bf16.msra.mxu0 %v614
    %872 = vmatprep.subr.bf16.mxu0 %v617
    %873 = vmatpush1.bf16.msra.mxu0 %v616
    %874 = vmatprep.subr.bf16.mxu0 %v619
    %875 = vmatpush1.bf16.msra.mxu0 %v618
    %876 = vmatprep.subr.bf16.mxu0 %v621
    %877 = vmatpush1.bf16.msra.mxu0 %v620
    %878 = vmatprep.subr.bf16.mxu0 %v623
    %879 = vmatpush1.bf16.msra.mxu0 %v622
    %880 = vmatprep.subr.bf16.mxu0 %v625
    %881 = vmatpush1.bf16.msra.mxu0 %v624
    %882 = vmatprep.subr.bf16.mxu0 %v627
    %883 = vmatpush1.bf16.msra.mxu0 %v626
    %884 = vmatprep.subr.bf16.mxu0 %v629
    %885 = vmatpush1.bf16.msra.mxu0 %v628
    %886 = vmatprep.subr.bf16.mxu0 %v631
    %887 = vmatpush1.bf16.msra.mxu0 %v630
    %888 = vmatprep.subr.bf16.mxu0 %v633
    %889 = vmatpush1.bf16.msra.mxu0 %v632
    %890 = vmatprep.subr.bf16.mxu0 %v635
    %891 = vmatpush1.bf16.msra.mxu0 %v634
    %892 = vmatprep.subr.bf16.mxu0 %v637
    %893 = vmatpush1.bf16.msra.mxu0 %v636
    %894 = vmatprep.subr.bf16.mxu0 %v639
    %895 = vmatpush1.bf16.msra.mxu0 %v638
    %896 = vmatprep.subr.bf16.mxu0 %v641
    %897 = vmatpush1.bf16.msra.mxu0 %v640
    %898 = vmatprep.mubr.bf16.mxu0 %v211
    %899 = vmatmul.mubr.bf16.gmra.mrb[0].mxu0 %v210
    %v900 = vpop.f32.mrb[0].mxu0
    %v901 = vadd.f32 0.0, %v900
    %v902 = vpop.f32.mrb[0].mxu0
    %v903 = vadd.f32 0.0, %v902
    %v904 = vpop.f32.mrb[0].mxu0
    %v905 = vpop.f32.mrb[0].mxu0
    %906 = vdwg.mxu0
    %907 = vmatprep.subr.bf16.mxu0 %v643
    %908 = vmatpush1.bf16.msra.mxu0 %v642
    %909 = vmatprep.subr.bf16.mxu0 %v645
    %910 = vmatpush1.bf16.msra.mxu0 %v644
    %911 = vmatprep.subr.bf16.mxu0 %v647
    %912 = vmatpush1.bf16.msra.mxu0 %v646
    %913 = vmatprep.subr.bf16.mxu0 %v649
    %914 = vmatpush1.bf16.msra.mxu0 %v648
    %915 = vmatprep.subr.bf16.mxu0 %v651
    %916 = vmatpush1.bf16.msra.mxu0 %v650
    %917 = vmatprep.subr.bf16.mxu0 %v653
    %918 = vmatpush1.bf16.msra.mxu0 %v652
    %919 = vmatprep.subr.bf16.mxu0 %v655
    %920 = vmatpush1.bf16.msra.mxu0 %v654
    %921 = vmatprep.subr.bf16.mxu0 %v657
    %922 = vmatpush1.bf16.msra.mxu0 %v656
    %923 = vmatprep.subr.bf16.mxu0 %v659
    %924 = vmatpush1.bf16.msra.mxu0 %v658
    %925 = vmatprep.subr.bf16.mxu0 %v661
    %926 = vmatpush1.bf16.msra.mxu0 %v660
    %927 = vmatprep.subr.bf16.mxu0 %v663
    %928 = vmatpush1.bf16.msra.mxu0 %v662
    %929 = vmatprep.subr.bf16.mxu0 %v665
    %930 = vmatpush1.bf16.msra.mxu0 %v664
    %931 = vmatprep.subr.bf16.mxu0 %v667
    %932 = vmatpush1.bf16.msra.mxu0 %v666
    %933 = vmatprep.subr.bf16.mxu0 %v669
    %934 = vmatpush1.bf16.msra.mxu0 %v668
    %935 = vmatprep.subr.bf16.mxu0 %v671
    %936 = vmatpush1.bf16.msra.mxu0 %v670
    %937 = vmatprep.subr.bf16.mxu0 %v673
    %938 = vmatpush1.bf16.msra.mxu0 %v672
    %939 = vmatprep.mubr.bf16.mxu0 %v213
    %940 = vmatmul.mubr.bf16.gmra.mrb[0].mxu0 %v212
    %v941 = vpop.f32.mrb[0].mxu0
    %v942 = vadd.f32 %v901, %v941
    %v943 = vpop.f32.mrb[0].mxu0
    %v944 = vadd.f32 %v903, %v943
    %v945 = vpop.f32.mrb[0].mxu0
    %v946 = vpop.f32.mrb[0].mxu0
    %947 = vdwg.mxu0
    %948 = vmatprep.subr.bf16.mxu0 %v675
    %949 = vmatpush1.bf16.msra.mxu0 %v674
    %950 = vmatprep.subr.bf16.mxu0 %v677
    %951 = vmatpush1.bf16.msra.mxu0 %v676
    %952 = vmatprep.subr.bf16.mxu0 %v679
    %953 = vmatpush1.bf16.msra.mxu0 %v678
    %954 = vmatprep.subr.bf16.mxu0 %v681
    %955 = vmatpush1.bf16.msra.mxu0 %v680
    %956 = vmatprep.subr.bf16.mxu0 %v683
    %957 = vmatpush1.bf16.msra.mxu0 %v682
    %958 = vmatprep.subr.bf16.mxu0 %v685
    %959 = vmatpush1.bf16.msra.mxu0 %v684
    %960 = vmatprep.subr.bf16.mxu0 %v687
    %961 = vmatpush1.bf16.msra.mxu0 %v686
    %962 = vmatprep.subr.bf16.mxu0 %v689
    %963 = vmatpush1.bf16.msra.mxu0 %v688
    %964 = vmatprep.subr.bf16.mxu0 %v691
    %965 = vmatpush1.bf16.msra.mxu0 %v690
    %966 = vmatprep.subr.bf16.mxu0 %v693
    %967 = vmatpush1.bf16.msra.mxu0 %v692
    %968 = vmatprep.subr.bf16.mxu0 %v695
    %969 = vmatpush1.bf16.msra.mxu0 %v694
    %970 = vmatprep.subr.bf16.mxu0 %v697
    %971 = vmatpush1.bf16.msra.mxu0 %v696
    %972 = vmatprep.subr.bf16.mxu0 %v699
    %973 = vmatpush1.bf16.msra.mxu0 %v698
    %974 = vmatprep.subr.bf16.mxu0 %v701
    %975 = vmatpush1.bf16.msra.mxu0 %v700
    %976 = vmatprep.subr.bf16.mxu0 %v703
    %977 = vmatpush1.bf16.msra.mxu0 %v702
    %978 = vmatprep.subr.bf16.mxu0 %v705
    %979 = vmatpush1.bf16.msra.mxu0 %v704
    %980 = vmatprep.mubr.bf16.mxu0 %v215
    %981 = vmatmul.mubr.bf16.gmra.mrb[0].mxu0 %v214
    %v982 = vpop.f32.mrb[0].mxu0
    %v983 = vadd.f32 %v942, %v982
    %v984 = vpop.f32.mrb[0].mxu0
    %v985 = vadd.f32 %v944, %v984
    %v986 = vpop.f32.mrb[0].mxu0
    %v987 = vpop.f32.mrb[0].mxu0
    %988 = vdwg.mxu0
    %989 = vmatprep.subr.bf16.mxu0 %v707
    %990 = vmatpush1.bf16.msra.mxu0 %v706
    %991 = vmatprep.subr.bf16.mxu0 %v709
    %992 = vmatpush1.bf16.msra.mxu0 %v708
    %993 = vmatprep.subr.bf16.mxu0 %v711
    %994 = vmatpush1.bf16.msra.mxu0 %v710
    %995 = vmatprep.subr.bf16.mxu0 %v713
    %996 = vmatpush1.bf16.msra.mxu0 %v712
    %997 = vmatprep.subr.bf16.mxu0 %v715
    %998 = vmatpush1.bf16.msra.mxu0 %v714
    %999 = vmatprep.subr.bf16.mxu0 %v717
    %1000 = vmatpush1.bf16.msra.mxu0 %v716
    %1001 = vmatprep.subr.bf16.mxu0 %v719
    %1002 = vmatpush1.bf16.msra.mxu0 %v718
    %1003 = vmatprep.subr.bf16.mxu0 %v721
    %1004 = vmatpush1.bf16.msra.mxu0 %v720
    %1005 = vmatprep.subr.bf16.mxu0 %v723
    %1006 = vmatpush1.bf16.msra.mxu0 %v722
    %1007 = vmatprep.subr.bf16.mxu0 %v725
    %1008 = vmatpush1.bf16.msra.mxu0 %v724
    %1009 = vmatprep.subr.bf16.mxu0 %v727
    %1010 = vmatpush1.bf16.msra.mxu0 %v726
    %1011 = vmatprep.subr.bf16.mxu0 %v729
    %1012 = vmatpush1.bf16.msra.mxu0 %v728
    %1013 = vmatprep.subr.bf16.mxu0 %v731
    %1014 = vmatpush1.bf16.msra.mxu0 %v730
    %1015 = vmatprep.subr.bf16.mxu0 %v733
    %1016 = vmatpush1.bf16.msra.mxu0 %v732
    %1017 = vmatprep.subr.bf16.mxu0 %v735
    %1018 = vmatpush1.bf16.msra.mxu0 %v734
    %1019 = vmatprep.subr.bf16.mxu0 %v737
    %1020 = vmatpush1.bf16.msra.mxu0 %v736
    %1021 = vmatprep.mubr.bf16.mxu0 %v217
    %1022 = vmatmul.mubr.bf16.gmra.mrb[0].mxu0 %v216
    %v1023 = vpop.f32.mrb[0].mxu0
    %v1024 = vadd.f32 %v983, %v1023
    %v1025 = vpop.f32.mrb[0].mxu0
    %v1026 = vadd.f32 %v985, %v1025
    %v1027 = vpop.f32.mrb[0].mxu0
    %v1028 = vpop.f32.mrb[0].mxu0
    %1029 = vdwg.mxu0
    %v1030 = vadd.f32 %v68, %v1024
    %v1031 = vadd.f32 %v69, %v1026
    %1032 = vst [vmem:[#allocation7] sm:$0xff] %v1030
    %1033 = vst [vmem:[#allocation7 + $0x8] sm:$0xff] %v1031
    // Predicated region
    $region26: #{tpu_custom_call.1} parent=1 // pred_check
      _
    $region27: #{tpu_custom_call.1} parent=1 // pred_check_branch
      %1035 = sbr.rel (0) target = $region29
    $region28: #{tpu_custom_call.1} parent=1 // pred_region
      %s1037 = ssub.s32 256, 256
      %1038 = vsyncadd [#allocation4], %s1037
      %s1040 = sshll.u32 [#allocation7], 4
      %s1041 = int_to_ptr.vmem [resolvable:$true] %s1040
      %1043 = dma.vmem_to_hbm [thread:$0]  %s1041, 256, %s3, [#allocation4]
    $region29: #{tpu_custom_call.1} parent=1 // pred_fallthru
      _
    // Predicated region
    $region30: #{tpu_custom_call.1} parent=1 // pred_check
      _
    $region31: #{tpu_custom_call.1} parent=1 // pred_check_branch
      %1045 = sbr.rel (0) target = $region33
    $region32: #{tpu_custom_call.1} parent=1 // pred_region
      %1046 = dma.done [#allocation4], 256
    $region33: #{tpu_custom_call.1} parent=1 // pred_fallthru
      _
    %1047 = vsyncpa [#allocation3], 1
    %1048 = vsyncpa [#allocation6], 1
    %1049 = vsyncpa [#allocation4], 1

</llo_original>
